<compile_context>
chip_gen: v6e
topology: v6e:2x2x1
jax: 0.10.0
libtpu: 0.0.40
codegen_flags: <defaults>
</compile_context>

<pallas_src>
import functools

import jax
import jax.numpy as jnp
from jax import lax
from jax.experimental import pallas as pl
from jax.experimental.pallas import tpu as pltpu

LANES = 128
MAX_TILE_ROWS = 4096            # (4096, 128) f32 block = 2 MiB per input
_VMEM_LIMIT_BYTES = 32 << 20    # room for 2x2 MiB double-buffered inputs + temps


def _sublane_align(dtype):
    """Sublane packing of the block's second-minor dim: 8/16/32 for 32/16/8-bit."""
    itemsize = jnp.dtype(dtype).itemsize
    return max(8, 8 * (4 // max(itemsize, 1)))


def _tensorcores_per_chip():
    """Best-effort TensorCore count per chip (v7x: 2, v5e/v6e: 1)."""
    try:
        info = pltpu.get_tpu_info()
        for name in ("num_cores", "num_tensorcores", "tensorcore_count",
                     "num_cores_per_chip", "core_count"):
            v = getattr(info, name, None)
            if isinstance(v, int) and 1 <= v <= 8:
                return v
    except Exception:
        pass
    try:
        kind = jax.devices()[0].device_kind.lower()
        if "v7" in kind or "7x" in kind:
            return 2
    except Exception:
        pass
    return 1


def _elementwise_focal_loss(x, t, gamma):
    """Per-element focal binary loss, eps-clamped exactly like the PyTorch module."""
    p = jax.nn.sigmoid(x)
    log_p = jnp.log(p + 1e-10)
    log_1mp = jnp.log(1.0 - p + 1e-10)
    if gamma == 0:
        # pow(x, 0) == 1 exactly -> plain BCE term.
        return -t * log_p - (1.0 - t) * log_1mp
    g = float(gamma)
    if g.is_integer() and 1 <= int(g) <= 4:
        # Small integer gamma: repeated VALU multiplies instead of pow on the
        # single-slot EUP.
        w_pos = 1.0 - p
        w_neg = p
        for _ in range(int(g) - 1):
            w_pos = w_pos * (1.0 - p)
            w_neg = w_neg * p
    else:
        # General gamma: pow(y, g) == exp(g*log(y)); reuse the eps-clamped logs
        # already computed (delta vs torch.pow is only the 1e-10 inside the
        # log), saving 2 EUP transcendentals per element vs jnp.power.
        w_pos = jnp.exp(g * log_1mp)
        w_neg = jnp.exp(g * log_p)
    return -t * w_pos * log_p - (1.0 - t) * w_neg * log_1mp


def _focal_kernel(x_ref, t_ref, o_ref, acc_ref, *, gamma, m_valid, tile_rows,
                  steps_per_shard, first_masked_block, any_mask_needed):
    s = pl.program_id(0)            # shard ("parallel" -> 2 TCs on v7x)
    j = pl.program_id(1)            # reduction step within shard ("arbitrary")
    b = s * steps_per_shard + j     # global (unclamped) block index

    @pl.when(j == 0)
    def _():
        acc_ref[...] = jnp.zeros_like(acc_ref)

    def accumulate(apply_mask):
        x = x_ref[...].astype(jnp.float32)
        t = t_ref[...].astype(jnp.float32)
        loss = _elementwise_focal_loss(x, t, gamma)
        if apply_mask:
            # Row-level mask (the valid region is row-aligned).  Keep jnp.where
            # (NOT a mask-multiply) so NaN/Inf from padded garbage rows cannot
            # leak into the sum.
            row = lax.broadcasted_iota(jnp.int32, loss.shape, 0)
            loss = jnp.where(b * tile_rows + row < m_valid, loss, 0.0)
        # Fold sublane-groups with plain vreg adds into the (8, 128) scratch;
        # the single cross-sublane reduce happens once per shard below.
        acc_ref[...] += loss.reshape(-1, 8, LANES).sum(axis=0)

    if any_mask_needed:
        # Only blocks that actually contain invalid rows (partial edge block or
        # clamped duplicates of an uneven shard split) pay for iota + select.
        @pl.when(b < first_masked_block)
        def _():
            accumulate(False)

        @pl.when(b >= first_masked_block)
        def _():
            accumulate(True)
    else:
        accumulate(False)

    @pl.when(j == steps_per_shard - 1)
    def _():
        o_ref[...] = jnp.sum(acc_ref[...], axis=0, keepdims=True)


def focal_binary_loss(inp, target, gamma=0, *, max_tile_rows=MAX_TILE_ROWS,
                      num_shards=None):
    """Pallas implementation of FocalBinaryLoss.forward (returns f32 scalar)."""
    assert inp.shape == target.shape
    n = int(inp.size)
    assert n > 0

    flat_x = jnp.ravel(inp)     # free bitcast
    flat_t = jnp.ravel(target)

    m = n // LANES              # full 128-lane rows
    tail = n - m * LANES        # < 128 leftover elements

    if m == 0:
        # Tiny input (< 128 elements): just do it in XLA.
        loss = _elementwise_focal_loss(flat_x.astype(jnp.float32),
                                       flat_t.astype(jnp.float32), gamma)
        return jnp.sum(loss) * (4.0 / n)

    # 128-aligned prefix goes through the kernel; the tail is folded in below
    # with a tiny jnp expression (no full-array pad of both inputs).
    if tail:
        x_main = lax.slice(flat_x, (0,), (m * LANES,))
        t_main = lax.slice(flat_t, (0,), (m * LANES,))
    else:
        x_main, t_main = flat_x, flat_t
    x2d = x_main.reshape(m, LANES)
    t2d = t_main.reshape(m, LANES)

    # dtype-aware row alignment (bf16 packs 16 rows/tile, int8/fp8 pack 32).
    row_align = max(_sublane_align(inp.dtype), _sublane_align(target.dtype))
    max_tile_rows = max(row_align, pl.cdiv(max_tile_rows, row_align) * row_align)
    tile_rows = min(max_tile_rows, pl.cdiv(m, row_align) * row_align)

    total_blocks = pl.cdiv(m, tile_rows)
    if num_shards is None:
        num_shards = max(1, min(_tensorcores_per_chip(), total_blocks))
    steps_per_shard = pl.cdiv(total_blocks, num_shards)

    covered_rows = num_shards * steps_per_shard * tile_rows
    assert covered_rows < 2**31, "int32 row-index math would overflow"
    any_mask_needed = covered_rows != m
    first_masked_block = m // tile_rows   # first block with padded/duplicate rows

    kernel = functools.partial(
        _focal_kernel,
        gamma=gamma,
        m_valid=m,
        tile_rows=tile_rows,
        steps_per_shard=steps_per_shard,
        first_masked_block=first_masked_block,
        any_mask_needed=any_mask_needed,
    )

    def in_map(s, j):
        # Clamp so duplicated trailing steps of an uneven shard split re-read a
        # valid block; their contribution is masked to zero in-kernel.
        return (jnp.minimum(s * steps_per_shard + j, total_blocks - 1), 0)

    general_gamma = not (gamma == 0 or
                         (float(gamma).is_integer() and 1 <= int(gamma) <= 4))
    cost = pl.CostEstimate(
        flops=int(12 * n),
        transcendentals=int((5 if general_gamma else 3) * n),
        bytes_accessed=int(n * (jnp.dtype(inp.dtype).itemsize
                                + jnp.dtype(target.dtype).itemsize)
                           + 4 * num_shards * LANES),
    )

    partials = pl.pallas_call(
        kernel,
        out_shape=jax.ShapeDtypeStruct((1, num_shards * LANES), jnp.float32),
        grid_spec=pltpu.PrefetchScalarGridSpec(
            num_scalar_prefetch=0,
            grid=(num_shards, steps_per_shard),
            in_specs=[
                pl.BlockSpec((tile_rows, LANES), in_map),
                pl.BlockSpec((tile_rows, LANES), in_map),
            ],
            out_specs=pl.BlockSpec((1, LANES), lambda s, j: (0, s)),
            scratch_shapes=[pltpu.VMEM((8, LANES), jnp.float32)],
        ),
        compiler_params=pltpu.CompilerParams(
            dimension_semantics=("parallel", "arbitrary"),
            vmem_limit_bytes=_VMEM_LIMIT_BYTES,
        ),
        cost_estimate=cost,
    )(x2d, t2d)

    # Final cross-lane/cross-shard reduction (+ tail) and mean * 4 in XLA (tiny).
    total = jnp.sum(partials)
    if tail:
        tx = flat_x[m * LANES:].astype(jnp.float32)
        tt = flat_t[m * LANES:].astype(jnp.float32)
        total = total + jnp.sum(_elementwise_focal_loss(tx, tt, gamma))
    return total * (4.0 / n)


def _reference(inp, target, gamma=0):
    p = jax.nn.sigmoid(inp.astype(jnp.float32))
    t = target.astype(jnp.float32)
    loss = (-t * jnp.power(1.0 - p, gamma) * jnp.log(p + 1e-10)
            - (1.0 - t) * jnp.power(p, gamma) * jnp.log(1.0 - p + 1e-10))
    return jnp.mean(loss) * 4.0


if __name__ == "__main__":
    key = jax.random.PRNGKey(0)

    # Primary check: NCHW logits / binary targets, module default gamma=0.
    k1, k2 = jax.random.split(key)
    x = jax.random.normal(k1, (2, 4, 16, 16), dtype=jnp.float32)
    tgt = (jax.random.uniform(k2, (2, 4, 16, 16)) > 0.5).astype(jnp.float32)

    out = jax.block_until_ready(focal_binary_loss(x, tgt, gamma=0))
    ref = _reference(x, tgt, gamma=0)
    assert jnp.allclose(out, ref, rtol=1e-5, atol=1e-5), (out, ref)

    # gamma=2 (integer fast path) on the same inputs.
    out2 = jax.block_until_ready(focal_binary_loss(x, tgt, gamma=2))
    ref2 = _reference(x, tgt, gamma=2)
    assert jnp.allclose(out2, ref2, rtol=1e-5, atol=1e-5), (out2, ref2)

    # Misaligned element count -> aligned-prefix kernel + jnp tail fold,
    # plus the masked partial edge block inside the kernel.
    k3, k4 = jax.random.split(k2)
    x3 = jax.random.normal(k3, (2, 4, 17, 19), dtype=jnp.float32)
    t3 = (jax.random.uniform(k4, (2, 4, 17, 19)) > 0.5).astype(jnp.float32)
    out3 = jax.block_until_ready(focal_binary_loss(x3, t3, gamma=0))
    ref3 = _reference(x3, t3, gamma=0)
    assert jnp.allclose(out3, ref3, rtol=1e-5, atol=1e-5), (out3, ref3)

    # Small tiles + forced 2-shard split -> exercises the "parallel" shard axis,
    # clamped duplicate blocks, and per-shard partial outputs on any chip.
    out4 = jax.block_until_ready(
        focal_binary_loss(x3, t3, gamma=0, max_tile_rows=8, num_shards=2))
    assert jnp.allclose(out4, ref3, rtol=1e-5, atol=1e-5), (out4, ref3)

    # bf16 inputs (halved HBM traffic) -> dtype-aware 16-row sublane alignment.
    xb = x.astype(jnp.bfloat16)
    tb = tgt.astype(jnp.bfloat16)
    out5 = jax.block_until_ready(focal_binary_loss(xb, tb, gamma=2))
    ref5 = _reference(xb, tb, gamma=2)
    assert jnp.allclose(out5, ref5, rtol=1e-4, atol=1e-4), (out5, ref5)

    print("KERNEL_OK")
</pallas_src>

<mosaic_0001>
module attributes {stable_mosaic.version = 11 : i64} {
  func.func @_focal_kernel(%arg0: i32, %arg1: i32, %arg2: memref<16x128xf32, #tpu.memory_space<vmem>>, %arg3: memref<16x128xf32, #tpu.memory_space<vmem>>, %arg4: memref<1x128xf32, #tpu.memory_space<vmem>>, %arg5: memref<8x128xf32, #tpu.memory_space<vmem>>) attributes {dimension_semantics = [#tpu.dimension_semantics<parallel>, #tpu.dimension_semantics<arbitrary>], iteration_bounds = array<i64: 1, 1>, scalar_prefetch = 0 : i64, scratch_operands = 1 : i64, tpu.core_type = #tpu.core_type<tc>, window_params = [{transform_indices = @transform_0, window_bounds = array<i64: 16, 128>}, {transform_indices = @transform_1, window_bounds = array<i64: 16, 128>}, {transform_indices = @transform_2, window_bounds = array<i64: 1, 128>}]} {
    %c0_i32 = arith.constant 0 : i32
    %0 = arith.cmpi eq, %arg1, %c0_i32 : i32
    %1 = arith.extui %0 : i1 to i32
    %c0_i32_0 = arith.constant 0 : i32
    %2 = arith.cmpi ne, %1, %c0_i32_0 : i32
    scf.if %2 {
      %cst_16 = arith.constant 0.000000e+00 : f32
      %33 = vector.broadcast %cst_16 : f32 to vector<8x128xf32>
      %c0_17 = arith.constant 0 : index
      %c0_18 = arith.constant 0 : index
      %34 = vector.load %arg5[%c0_17, %c0_18] : memref<8x128xf32, #tpu.memory_space<vmem>>, vector<8x128xf32>
      tpu.vector_store %arg5[%c0_17, %c0_18], %33 {strides = array<i32>} : memref<8x128xf32, #tpu.memory_space<vmem>>, vector<8x128xf32>,
    } else {
    }
    %c0 = arith.constant 0 : index
    %c0_1 = arith.constant 0 : index
    %3 = vector.load %arg2[%c0, %c0_1] : memref<16x128xf32, #tpu.memory_space<vmem>>, vector<16x128xf32>
    %c0_2 = arith.constant 0 : index
    %c0_3 = arith.constant 0 : index
    %4 = vector.load %arg3[%c0_2, %c0_3] : memref<16x128xf32, #tpu.memory_space<vmem>>, vector<16x128xf32>
    %5 = arith.negf %3 : vector<16x128xf32>
    %6 = math.exp %5 : vector<16x128xf32>
    %cst = arith.constant 1.000000e+00 : f32
    %7 = vector.broadcast %cst : f32 to vector<16x128xf32>
    %8 = arith.addf %7, %6 : vector<16x128xf32>
    %9 = arith.divf %7, %8 : vector<16x128xf32>
    %cst_4 = arith.constant 1.000000e-10 : f32
    %10 = vector.broadcast %cst_4 : f32 to vector<16x128xf32>
    %11 = arith.addf %9, %10 : vector<16x128xf32>
    %12 = math.log %11 : vector<16x128xf32>
    %cst_5 = arith.constant 1.000000e+00 : f32
    %13 = vector.broadcast %cst_5 : f32 to vector<16x128xf32>
    %14 = arith.subf %13, %9 : vector<16x128xf32>
    %cst_6 = arith.constant 1.000000e-10 : f32
    %15 = vector.broadcast %cst_6 : f32 to vector<16x128xf32>
    %16 = arith.addf %14, %15 : vector<16x128xf32>
    %17 = math.log %16 : vector<16x128xf32>
    %cst_7 = arith.constant 0.000000e+00 : f32
    %18 = vector.broadcast %cst_7 : f32 to vector<16x128xf32>
    %19 = arith.subf %18, %4 : vector<16x128xf32>
    %20 = arith.mulf %19, %12 : vector<16x128xf32>
    %cst_8 = arith.constant 1.000000e+00 : f32
    %21 = vector.broadcast %cst_8 : f32 to vector<16x128xf32>
    %22 = arith.subf %21, %4 : vector<16x128xf32>
    %23 = arith.mulf %22, %17 : vector<16x128xf32>
    %24 = arith.subf %20, %23 : vector<16x128xf32>
    %c0_9 = arith.constant 0 : index
    %c0_10 = arith.constant 0 : index
    %25 = vector.load %arg5[%c0_9, %c0_10] : memref<8x128xf32, #tpu.memory_space<vmem>>, vector<8x128xf32>
    %26 = vector.shape_cast %24 : vector<16x128xf32> to vector<2x8x128xf32>
    %cst_11 = arith.constant dense<0.000000e+00> : vector<8x128xf32>
    %27 = vector.multi_reduction <add>, %26, %cst_11 [0] : vector<2x8x128xf32> to vector<8x128xf32>
    %28 = arith.addf %25, %27 : vector<8x128xf32>
    %c0_12 = arith.constant 0 : index
    %c0_13 = arith.constant 0 : index
    %29 = vector.load %arg5[%c0_12, %c0_13] : memref<8x128xf32, #tpu.memory_space<vmem>>, vector<8x128xf32>
    tpu.vector_store %arg5[%c0_12, %c0_13], %28 {strides = array<i32>} : memref<8x128xf32, #tpu.memory_space<vmem>>, vector<8x128xf32>,
    %c0_i32_14 = arith.constant 0 : i32
    %30 = arith.cmpi eq, %arg1, %c0_i32_14 : i32
    %31 = arith.extui %30 : i1 to i32
    %c0_i32_15 = arith.constant 0 : i32
    %32 = arith.cmpi ne, %31, %c0_i32_15 : i32
    scf.if %32 {
      %c0_16 = arith.constant 0 : index
      %c0_17 = arith.constant 0 : index
      %33 = vector.load %arg5[%c0_16, %c0_17] : memref<8x128xf32, #tpu.memory_space<vmem>>, vector<8x128xf32>
      %cst_18 = arith.constant dense<0.000000e+00> : vector<128xf32>
      %34 = vector.multi_reduction <add>, %33, %cst_18 [0] : vector<8x128xf32> to vector<128xf32>
      %35 = vector.shape_cast %34 : vector<128xf32> to vector<1x128xf32>
      %c0_19 = arith.constant 0 : index
      %c0_20 = arith.constant 0 : index
      %36 = vector.load %arg4[%c0_19, %c0_20] : memref<1x128xf32, #tpu.memory_space<vmem>>, vector<1x128xf32>
      tpu.vector_store %arg4[%c0_19, %c0_20], %35 {strides = array<i32>} : memref<1x128xf32, #tpu.memory_space<vmem>>, vector<1x128xf32>,
    } else {
    }
    return
  }
  func.func @transform_0(%arg0: i32, %arg1: i32) -> (i32, i32) {
    %c1_i32 = arith.constant 1 : i32
    %0 = arith.muli %arg0, %c1_i32 : i32
    %1 = arith.addi %0, %arg1 : i32
    %c0_i32 = arith.constant 0 : i32
    %2 = arith.minsi %1, %c0_i32 : i32
    %c0_i32_0 = arith.constant 0 : i32
    %c0_i32_1 = arith.constant 0 : i32
    return %2, %c0_i32_0 : i32, i32
  }
  func.func @transform_1(%arg0: i32, %arg1: i32) -> (i32, i32) {
    %c1_i32 = arith.constant 1 : i32
    %0 = arith.muli %arg0, %c1_i32 : i32
    %1 = arith.addi %0, %arg1 : i32
    %c0_i32 = arith.constant 0 : i32
    %2 = arith.minsi %1, %c0_i32 : i32
    %c0_i32_0 = arith.constant 0 : i32
    %c0_i32_1 = arith.constant 0 : i32
    return %2, %c0_i32_0 : i32, i32
  }
  func.func @transform_2(%arg0: i32, %arg1: i32) -> (i32, i32) {
    %c0_i32 = arith.constant 0 : i32
    %c0_i32_0 = arith.constant 0 : i32
    return %c0_i32, %arg0 : i32, i32
  }
}

</mosaic_0001>

<llo_original>
// kernel: tpu_custom_call.1
$region0: #{tpu_custom_call.1}
  #allocation0 [shape = 'u32[]', space=smem, size = 0x4, offset = 0x4, fixed_abs, tag = 'smem constant byte address 0x4 - core index']
  #allocation1 [shape = 'u32[144,128]{1,0:T(1,128)}', space=vmem, size = 0x12000, scoped, tag = 'internal scratch']
  #allocation2 [shape = 'f32[8,128]{1,0:T(8,128)}', space=vmem, size = 0x1000, scoped, tag = 'scratch operand']
  %s0 = inlined_call_operand.hbm [shape: f32[16,128], index: 0, kind: input, shape index: {}]
  %s1 = inlined_call_operand.hbm [shape: f32[16,128], index: 1, kind: input, shape index: {}]
  %s2 = inlined_call_operand.hbm [shape: f32[1,128], index: 2, kind: output, shape index: {}]
  %s3 = sld [smem:[#allocation0]]
  $region34: #{tpu_custom_call.1} parent=0
    _
  %s5 = ssub.s32 1, %s3
  %s6 = scalar_select 0, %s5, %s3
  $region1: #{tpu_custom_call.1} parent=0
    #allocation3 [shape = 'u8[8192]{0}', space=vmem, size = 0x2000, scoped, tag = 'input window, operand 0, single buffered']
    #allocation4 [shape = 's32[1]{0}', space=sflag, size = 0x4, scoped, tag = 'scoped memory for tpu_custom_call.1']
    #allocation5 [shape = 's32[1]{0}', space=sflag, size = 0x4, scoped, tag = 'scoped memory for tpu_custom_call.1']
    #allocation6 [shape = 'u8[8192]{0}', space=vmem, size = 0x2000, scoped, tag = 'input window, operand 1, single buffered']
    #allocation7 [shape = 's32[1]{0}', space=sflag, size = 0x4, scoped, tag = 'scoped memory for tpu_custom_call.1']
    #allocation8 [shape = 'u8[512]{0}', space=vmem, size = 0x400, scoped, tag = 'output window, operand 0, single buffered']
    %7 = vsyncpa [#allocation4], 0
    %8 = vsyncpa [#allocation7], 0
    %9 = vsyncpa [#allocation5], 0
    // Predicated region
    $region2: #{tpu_custom_call.1} parent=1 // pred_check
      _
    $region3: #{tpu_custom_call.1} parent=1 // pred_check_branch
      %11 = sbr.rel (0) target = $region5
    $region4: #{tpu_custom_call.1} parent=1 // pred_region
      %s12 = sadd.s32 0, 0
      %p13 = scmp.lt.s32.totalorder %s12, 0
      %s14 = scalar_select %p13, %s12, 0
      %s15 = smul.u32 2, %s14
      %s17 = ssub.s32 256, 256
      %18 = vsyncadd [#allocation4], %s17
      %s19 = smul.addr %s15, 128
      %s20 = scalar_lea.hbm %s0, %s19
      %s21 = sshll.u32 [#allocation3], 4
      %s22 = int_to_ptr.vmem [resolvable:$true] %s21
      %27 = dma.hbm_to_vmem [thread:$0]  %s20, 256, %s22, [#allocation4], 128, 128, 8
    $region5: #{tpu_custom_call.1} parent=1 // pred_fallthru
      _
    // Predicated region
    $region6: #{tpu_custom_call.1} parent=1 // pred_check
      _
    $region7: #{tpu_custom_call.1} parent=1 // pred_check_branch
      %29 = sbr.rel (0) target = $region9
    $region8: #{tpu_custom_call.1} parent=1 // pred_region
      %s30 = sadd.s32 0, 0
      %p31 = scmp.lt.s32.totalorder %s30, 0
      %s32 = scalar_select %p31, %s30, 0
      %s33 = smul.u32 2, %s32
      %s35 = ssub.s32 256, 256
      %36 = vsyncadd [#allocation7], %s35
      %s37 = smul.addr %s33, 128
      %s38 = scalar_lea.hbm %s1, %s37
      %s39 = sshll.u32 [#allocation6], 4
      %s40 = int_to_ptr.vmem [resolvable:$true] %s39
      %45 = dma.hbm_to_vmem [thread:$0]  %s38, 256, %s40, [#allocation7], 128, 128, 8
    $region9: #{tpu_custom_call.1} parent=1 // pred_fallthru
      _
    // Predicated region
    $region10: #{tpu_custom_call.1} parent=1 // pred_check
      _
    $region11: #{tpu_custom_call.1} parent=1 // pred_check_branch
      %47 = sbr.rel (0) target = $region13
    $region12: #{tpu_custom_call.1} parent=1 // pred_region
      %48 = dma.done [#allocation4], 256
    $region13: #{tpu_custom_call.1} parent=1 // pred_fallthru
      _
    // Predicated region
    $region14: #{tpu_custom_call.1} parent=1 // pred_check
      _
    $region15: #{tpu_custom_call.1} parent=1 // pred_check_branch
      %50 = sbr.rel (0) target = $region17
    $region16: #{tpu_custom_call.1} parent=1 // pred_region
      %51 = dma.done [#allocation7], 256
    $region17: #{tpu_custom_call.1} parent=1 // pred_fallthru
      _
    %s52 = sadd.s32 0, 0
    %p53 = scmp.lt.s32.totalorder %s52, 0
    %s54 = scalar_select %p53, %s52, 0
    %s55 = smul.u32 2, %s54
    %s56 = sadd.s32 0, 0
    %p57 = scmp.lt.s32.totalorder %s56, 0
    %s58 = scalar_select %p57, %s56, 0
    %s59 = smul.u32 2, %s58
    %p60 = scmp.eq.s32.totalorder 0, 0
    // Predicated region
    $region18: #{tpu_custom_call.1} parent=1 // pred_check
      %p61 = pneg %p60
    $region19: #{tpu_custom_call.1} parent=1 // pred_check_branch
      %63 = sbr.rel (%p61) target = $region21
    $region20: #{tpu_custom_call.1} parent=1 // pred_region
      %64 = vst [vmem:[#allocation2] sm:$0xff] 0.0
    $region21: #{tpu_custom_call.1} parent=1 // pred_fallthru
      _
    %v65 = vld [vmem:[#allocation3] sm:$0xff]
    %v66 = vld [vmem:[#allocation3 + $0x8] sm:$0xff]
    %v67 = vld [vmem:[#allocation6] sm:$0xff]
    %v68 = vld [vmem:[#allocation6 + $0x8] sm:$0xff]
    %v69 = vxor.u32 %v65, 2147483648
    %v70 = vxor.u32 %v66, 2147483648
    %v71 = vmul.f32 %v69, 1.442695
    %v72 = vpow.pop %v71
    %v73 = vmul.f32 %v70, 1.442695
    %v74 = vpow.pop %v73
    %v75 = vadd.f32 %v72, 1.0
    %v76 = vadd.f32 %v74, 1.0
    %v77 = vrcp.pop %v75
    %v78 = vmul.f32 1.0, %v77
    %v79 = vrcp.pop %v76
    %v80 = vmul.f32 1.0, %v79
    %v81 = vadd.f32 %v78, 1e-10
    %v82 = vadd.f32 %v80, 1e-10
    %v83 = vlog2.pop %v81
    %v84 = vmul.f32 %v83, 0.6931472
    %v85 = vlog2.pop %v82
    %v86 = vmul.f32 %v85, 0.6931472
    %v87 = vsub.f32 1.0, %v78
    %v88 = vsub.f32 1.0, %v80
    %v89 = vadd.f32 %v87, 1e-10
    %v90 = vadd.f32 %v88, 1e-10
    %v91 = vlog2.pop %v89
    %v92 = vmul.f32 %v91, 0.6931472
    %v93 = vlog2.pop %v90
    %v94 = vmul.f32 %v93, 0.6931472
    %v95 = vsub.f32 0.0, %v67
    %v96 = vsub.f32 0.0, %v68
    %v97 = vmul.f32 %v95, %v84
    %v98 = vmul.f32 %v96, %v86
    %v99 = vsub.f32 1.0, %v67
    %v100 = vsub.f32 1.0, %v68
    %v101 = vmul.f32 %v99, %v92
    %v102 = vmul.f32 %v100, %v94
    %v103 = vsub.f32 %v97, %v101
    %v104 = vsub.f32 %v98, %v102
    %v105 = vld [vmem:[#allocation2] sm:$0xff]
    %v106 = vadd.f32 %v103, %v104
    %v107 = vadd.f32 %v105, %v106
    %108 = vst [vmem:[#allocation2] sm:$0xff] %v107
    // Predicated region
    $region22: #{tpu_custom_call.1} parent=1 // pred_check
      %p109 = pneg %p60
    $region23: #{tpu_custom_call.1} parent=1 // pred_check_branch
      %111 = sbr.rel (%p109) target = $region25
    $region24: #{tpu_custom_call.1} parent=1 // pred_region
      %v112 = vld [vmem:[#allocation2] sm:$0xff]
      %v113 = vrot.slane %v112, 4
      %v114 = vadd.f32 %v112, %v113
      %v115 = vrot.slane %v114, 2
      %v116 = vadd.f32 %v114, %v115
      %v117 = vrot.slane %v116, 1
      %v118 = vadd.f32 %v116, %v117
      %119 = vst [vmem:[#allocation8] sm:$0x1] %v118
    $region25: #{tpu_custom_call.1} parent=1 // pred_fallthru
      _
    // Predicated region
    $region26: #{tpu_custom_call.1} parent=1 // pred_check
      _
    $region27: #{tpu_custom_call.1} parent=1 // pred_check_branch
      %121 = sbr.rel (0) target = $region29
    $region28: #{tpu_custom_call.1} parent=1 // pred_region
      %s123 = ssub.s32 16, 16
      %124 = vsyncadd [#allocation5], %s123
      %s126 = sshll.u32 [#allocation8], 4
      %s127 = int_to_ptr.vmem [resolvable:$true] %s126
      %129 = dma.vmem_to_hbm [thread:$0]  %s127, 16, %s2, [#allocation5]
    $region29: #{tpu_custom_call.1} parent=1 // pred_fallthru
      _
    // Predicated region
    $region30: #{tpu_custom_call.1} parent=1 // pred_check
      _
    $region31: #{tpu_custom_call.1} parent=1 // pred_check_branch
      %131 = sbr.rel (0) target = $region33
    $region32: #{tpu_custom_call.1} parent=1 // pred_region
      %132 = dma.done [#allocation5], 16
    $region33: #{tpu_custom_call.1} parent=1 // pred_fallthru
      _
    %133 = vsyncpa [#allocation4], 1
    %134 = vsyncpa [#allocation7], 1
    %135 = vsyncpa [#allocation5], 1

</llo_original>
